<compile_context>
chip_gen: v7x
topology: tpu7x:2x2x1
jax: 0.10.0
libtpu: 0.0.40
codegen_flags: <defaults>
</compile_context>

<pallas_src>
import functools

import jax
import jax.numpy as jnp
from jax.experimental import pallas as pl
from jax.experimental.pallas import tpu as pltpu

FOCAL_WEIGHT = 0.7
DICE_WEIGHT = 0.3
FOCAL_ALPHA = 1.0
FOCAL_GAMMA = 2.0          # applied as an explicit square (gamma == 2)
IGNORE_INDEX = 255
DICE_SMOOTH = 1e-6

_MAX_TILE_HW = 32768       # lanes; grid-step overhead is amortized well before this


def _round_down_128(x: int) -> int:
    return max(128, x - (x % 128))


def _vmem_capacity_bytes() -> int:
    """Physical VMEM per core; conservative (v7x) fallback if the query fails."""
    try:
        return int(pltpu.get_tpu_info().vmem_capacity_bytes)
    except Exception:
        return 64 * 1024 * 1024


def _pick_tile_hw(hw: int, c: int, x_itemsize: int, budget_bytes: int) -> int:
    """Largest spatial tile (lanes) whose working set fits the VMEM budget.

    Per-lane bytes: double-buffered logits block (2*C*itemsize), double-buffered
    int32 target block (8 B), and ~7 compiler-materialized (C, tile) f32
    intermediates (upcast logits, e, probs, onehot, prod, logits*onehot, ...).
    """
    per_lane = 2 * c * x_itemsize + 2 * 4 + 7 * c * 4 + 64
    t = min(_MAX_TILE_HW, max(128, budget_bytes // per_lane))
    t = _round_down_128(t)
    # A full-extent block is always legal (no 128-multiple requirement), so if
    # the budgeted tile covers HW just use HW itself.
    return hw if t >= hw else t


def _make_loss_kernel(hw: int):
    """Kernel closure over the true (unpadded) spatial size."""

    def kernel(x_ref, t_ref, out_ref, acc_i, acc_p, acc_t, acc_f):
        # x_ref: (1, C, T) logits tile (any float dtype), t_ref: (1, 1, T) int32.
        s = pl.program_id(1)             # spatial-split index (dual-TC on v7x)
        h = pl.program_id(2)             # spatial tile index within the split
        inner = pl.num_programs(2)

        @pl.when(h == 0)
        def _init():
            acc_i[...] = jnp.zeros_like(acc_i)
            acc_p[...] = jnp.zeros_like(acc_p)
            acc_t[...] = jnp.zeros_like(acc_t)
            acc_f[...] = jnp.zeros_like(acc_f)

        logits = x_ref[0].astype(jnp.float32)            # (C, T), bf16 -> f32 upcast
        tgt = t_ref[0]                                   # (1, T) int32
        C, T = logits.shape

        # Global lane position; lanes >= hw are padding (partial last block, or
        # the fully-duplicated overhang block when the spatial tiles do not
        # split evenly across the parallel s axis).  Pad contents are
        # unspecified, so scrub them before any arithmetic.
        pos = (s * inner + h) * T + jax.lax.broadcasted_iota(jnp.int32, (1, T), 1)
        in_range = pos < hw                               # (1, T) bool
        logits = jnp.where(in_range, logits, 0.0)
        tgt = jnp.where(in_range, tgt, IGNORE_INDEX)

        # --- softmax over the channel (sublane) axis ---
        m = jnp.max(logits, axis=0, keepdims=True)        # (1, T)
        e = jnp.exp(logits - m)                           # (C, T)  (only big exp)
        denom = jnp.sum(e, axis=0, keepdims=True)         # (1, T)
        lse = m + jnp.log(denom)                          # (1, T)
        # Fold the spatial pad mask into the normalization: probs == 0 on pads,
        # so the dice prob-sum needs no extra (C, T) masking multiply.
        inv = pl.reciprocal(denom, approx=False) * in_range.astype(jnp.float32)
        probs = e * inv                                   # (C, T)

        # --- one-hot targets and reused products ---
        cls_iota = jax.lax.broadcasted_iota(jnp.int32, (C, T), 0)
        onehot = (cls_iota == tgt).astype(jnp.float32)    # all-zero for ignore/pads
        prod = probs * onehot                             # dice intersection AND pt

        # --- per-pixel cross entropy + focal term ---
        valid = (tgt != IGNORE_INDEX).astype(jnp.float32)          # 0 on pads too
        tgt_logit = jnp.sum(logits * onehot, axis=0, keepdims=True)
        ce = (lse - tgt_logit) * valid                             # 0 if ignored
        pt = jnp.sum(prod, axis=0, keepdims=True)   # == exp(-ce) for valid pixels
        u = 1.0 - pt
        focal = FOCAL_ALPHA * u * u * ce            # ignored / padded pixels -> 0

        # --- per-tile partial reductions into tiny accumulators ---
        # Lane reductions lower to vreg-wise VPU adds + a small cross-lane tail;
        # the accumulators are (C, 1)/(1, 1), so there is no slab store traffic.
        acc_i[...] += jnp.sum(prod, axis=1, keepdims=True)     # (C, 1)
        acc_p[...] += jnp.sum(probs, axis=1, keepdims=True)    # (C, 1)
        acc_t[...] += jnp.sum(onehot, axis=1, keepdims=True)   # (C, 1)
        acc_f[...] += jnp.sum(focal, axis=1, keepdims=True)    # (1, 1)

        @pl.when(h == inner - 1)
        def _finalize():
            inter = jnp.sum(acc_i[...], axis=1).reshape(1, C)
            psum = jnp.sum(acc_p[...], axis=1).reshape(1, C)
            tsum = jnp.sum(acc_t[...], axis=1).reshape(1, C)
            frow = jnp.broadcast_to(acc_f[...], (1, C))
            out_ref[0, 0, 0:1, :] = inter
            out_ref[0, 0, 1:2, :] = psum
            out_ref[0, 0, 2:3, :] = tsum
            out_ref[0, 0, 3:4, :] = frow

    return kernel


def combined_loss(logits_nchw, targets_nhw, *, max_tile_hw=None):
    """logits_nchw: (N, C, H, W) float (f32 or bf16); targets_nhw: (N, H, W) int."""
    N, C, H, W = logits_nchw.shape
    HW = H * W

    cap = _vmem_capacity_bytes()
    budget = cap // 2                                    # per-step working set
    vmem_limit = max(32 * 1024 * 1024, (3 * cap) // 4)   # 48 MiB v7x, 96 MiB v5e/v6e

    itemsize = jnp.dtype(logits_nchw.dtype).itemsize
    tile = _pick_tile_hw(HW, C, itemsize, budget)
    if max_tile_hw is not None:                          # test hook / manual override
        forced = _round_down_128(max_tile_hw)
        tile = HW if forced >= HW else min(tile, forced)

    num_tiles = pl.cdiv(HW, tile)
    # Use both v7x TensorCores when the batch axis alone cannot (N == 1).
    nsplit = 2 if (N == 1 and num_tiles >= 2) else 1
    inner = pl.cdiv(num_tiles, nsplit)

    if nsplit * inner == num_tiles:
        def sp_idx(n, s, h):
            return (n, 0, s * inner + h)
    else:
        # One overhang step on the last split: clamp the DMA to a valid block;
        # the kernel masks it out entirely via the global lane position.
        def sp_idx(n, s, h):
            return (n, 0, jnp.minimum(s * inner + h, num_tiles - 1))

    x = logits_nchw.reshape(N, C, HW)                    # keep caller dtype (bf16 ok)
    t = targets_nhw.reshape(N, 1, HW).astype(jnp.int32)

    # stats[n, s] rows: 0 = intersection(c), 1 = prob_sum(c), 2 = target_sum(c),
    #                   3 = focal sum (broadcast across lanes)
    stats = pl.pallas_call(
        _make_loss_kernel(HW),
        out_shape=jax.ShapeDtypeStruct((N, nsplit, 4, C), jnp.float32),
        grid_spec=pltpu.PrefetchScalarGridSpec(
            num_scalar_prefetch=0,
            grid=(N, nsplit, inner),
            in_specs=[
                pl.BlockSpec((1, C, tile), sp_idx),
                pl.BlockSpec((1, 1, tile), sp_idx),
            ],
            out_specs=pl.BlockSpec((1, 1, 4, C), lambda n, s, h: (n, s, 0, 0)),
            scratch_shapes=[
                pltpu.VMEM((C, 1), jnp.float32),   # sum of probs*onehot
                pltpu.VMEM((C, 1), jnp.float32),   # sum of probs
                pltpu.VMEM((C, 1), jnp.float32),   # sum of onehot
                pltpu.VMEM((1, 1), jnp.float32),   # sum of focal
            ],
        ),
        compiler_params=pltpu.CompilerParams(
            dimension_semantics=("parallel", "parallel", "arbitrary"),
            vmem_limit_bytes=int(vmem_limit),
        ),
    )(x, t)

    # --- tiny scalar glue (matches the PyTorch reductions exactly) ---
    inter = jnp.sum(stats[:, :, 0, :], axis=1)           # (N, C)
    psum = jnp.sum(stats[:, :, 1, :], axis=1)
    tsum = jnp.sum(stats[:, :, 2, :], axis=1)
    focal_sum = jnp.sum(stats[:, :, 3, 0])

    focal_loss = focal_sum / (N * H * W)                  # .mean() over all pixels
    dice = (2.0 * inter + DICE_SMOOTH) / (psum + tsum + DICE_SMOOTH)
    dice_loss = 1.0 - jnp.mean(dice)
    return FOCAL_WEIGHT * focal_loss + DICE_WEIGHT * dice_loss


def _reference_loss(logits, targets):
    """Pure-JAX reference mirroring the PyTorch module (for sanity check)."""
    N, C, H, W = logits.shape
    # focal
    logp = jax.nn.log_softmax(logits, axis=1)                        # (N,C,H,W)
    onehot = jax.nn.one_hot(targets, C, axis=1, dtype=jnp.float32)   # (N,C,H,W)
    ce = -jnp.sum(logp * onehot, axis=1)                             # (N,H,W)
    ce = jnp.where(targets == IGNORE_INDEX, 0.0, ce)
    pt = jnp.exp(-ce)
    focal = jnp.mean(FOCAL_ALPHA * (1.0 - pt) ** FOCAL_GAMMA * ce)
    # dice
    probs = jax.nn.softmax(logits, axis=1)
    inter = jnp.sum(probs * onehot, axis=(2, 3))
    dice = (2.0 * inter + DICE_SMOOTH) / (
        jnp.sum(probs, axis=(2, 3)) + jnp.sum(onehot, axis=(2, 3)) + DICE_SMOOTH)
    dice_loss = 1.0 - jnp.mean(dice)
    return FOCAL_WEIGHT * focal + DICE_WEIGHT * dice_loss


if __name__ == "__main__":
    key = jax.random.PRNGKey(0)
    k1, k2, k3, k4 = jax.random.split(key, 4)

    # Test 1: canonical small shape, f32 logits.
    N, C, H, W = 2, 4, 16, 16
    logits = jax.random.normal(k1, (N, C, H, W), dtype=jnp.float32)
    targets = jax.random.randint(k2, (N, H, W), 0, C, dtype=jnp.int32)
    targets = targets.at[0, :2, :4].set(IGNORE_INDEX)     # exercise ignore path

    loss = jax.block_until_ready(jax.jit(combined_loss)(logits, targets))
    ref = _reference_loss(logits, targets)
    assert jnp.allclose(loss, ref, atol=1e-5, rtol=1e-5), (loss, ref)

    # Test 2: bf16 logits (halved HBM traffic); reference uses the same bf16
    # values upcast to f32, so all math matches the in-kernel f32 compute.
    logits_bf16 = logits.astype(jnp.bfloat16)
    loss_bf = jax.block_until_ready(jax.jit(combined_loss)(logits_bf16, targets))
    ref_bf = _reference_loss(logits_bf16.astype(jnp.float32), targets)
    assert jnp.allclose(loss_bf, ref_bf, atol=1e-5, rtol=1e-5), (loss_bf, ref_bf)

    # Test 3: awkward shape (HW % 128 != 0) + forced small tile: exercises the
    # padded-lane masking, multi-tile accumulation and the N==1 dual-core
    # spatial split (including the masked overhang tile).
    N2, C2, H2, W2 = 1, 5, 19, 17
    logits2 = jax.random.normal(k3, (N2, C2, H2, W2), dtype=jnp.float32)
    targets2 = jax.random.randint(k4, (N2, H2, W2), 0, C2, dtype=jnp.int32)
    targets2 = targets2.at[0, :3, :5].set(IGNORE_INDEX)
    f_small = jax.jit(functools.partial(combined_loss, max_tile_hw=128))
    loss2 = jax.block_until_ready(f_small(logits2, targets2))
    ref2 = _reference_loss(logits2, targets2)
    assert jnp.allclose(loss2, ref2, atol=1e-5, rtol=1e-5), (loss2, ref2)

    print("KERNEL_OK")
</pallas_src>

<mosaic_0001>
module attributes {stable_mosaic.version = 11 : i64} {
  func.func @kernel(%arg0: i32, %arg1: i32, %arg2: i32, %arg3: memref<1x4x256xf32, #tpu.memory_space<vmem>>, %arg4: memref<1x1x256xi32, #tpu.memory_space<vmem>>, %arg5: memref<1x1x4x4xf32, #tpu.memory_space<vmem>>, %arg6: memref<4x1xf32, #tpu.memory_space<vmem>>, %arg7: memref<4x1xf32, #tpu.memory_space<vmem>>, %arg8: memref<4x1xf32, #tpu.memory_space<vmem>>, %arg9: memref<1x1xf32, #tpu.memory_space<vmem>>) attributes {dimension_semantics = [#tpu.dimension_semantics<parallel>, #tpu.dimension_semantics<parallel>, #tpu.dimension_semantics<arbitrary>], iteration_bounds = array<i64: 2, 1, 1>, scalar_prefetch = 0 : i64, scratch_operands = 4 : i64, tpu.core_type = #tpu.core_type<tc>, window_params = [{transform_indices = @transform_0, window_bounds = array<i64: 1, 4, 256>}, {transform_indices = @transform_1, window_bounds = array<i64: 1, 1, 256>}, {transform_indices = @transform_2, window_bounds = array<i64: 1, 1, 4, 4>}]} {
    %c0_i32 = arith.constant 0 : i32
    %0 = arith.cmpi eq, %arg2, %c0_i32 : i32
    %1 = arith.extui %0 : i1 to i32
    %c0_i32_0 = arith.constant 0 : i32
    %2 = arith.cmpi ne, %1, %c0_i32_0 : i32
    scf.if %2 {
      %cst_36 = arith.constant 0.000000e+00 : f32
      %82 = vector.broadcast %cst_36 : f32 to vector<4x1xf32>
      %c0_37 = arith.constant 0 : index
      %c0_38 = arith.constant 0 : index
      %83 = vector.load %arg6[%c0_37, %c0_38] : memref<4x1xf32, #tpu.memory_space<vmem>>, vector<4x1xf32>
      tpu.vector_store %arg6[%c0_37, %c0_38], %82 {strides = array<i32>} : memref<4x1xf32, #tpu.memory_space<vmem>>, vector<4x1xf32>,
      %cst_39 = arith.constant 0.000000e+00 : f32
      %84 = vector.broadcast %cst_39 : f32 to vector<4x1xf32>
      %c0_40 = arith.constant 0 : index
      %c0_41 = arith.constant 0 : index
      %85 = vector.load %arg7[%c0_40, %c0_41] : memref<4x1xf32, #tpu.memory_space<vmem>>, vector<4x1xf32>
      tpu.vector_store %arg7[%c0_40, %c0_41], %84 {strides = array<i32>} : memref<4x1xf32, #tpu.memory_space<vmem>>, vector<4x1xf32>,
      %cst_42 = arith.constant 0.000000e+00 : f32
      %86 = vector.broadcast %cst_42 : f32 to vector<4x1xf32>
      %c0_43 = arith.constant 0 : index
      %c0_44 = arith.constant 0 : index
      %87 = vector.load %arg8[%c0_43, %c0_44] : memref<4x1xf32, #tpu.memory_space<vmem>>, vector<4x1xf32>
      tpu.vector_store %arg8[%c0_43, %c0_44], %86 {strides = array<i32>} : memref<4x1xf32, #tpu.memory_space<vmem>>, vector<4x1xf32>,
      %cst_45 = arith.constant 0.000000e+00 : f32
      %88 = vector.broadcast %cst_45 : f32 to vector<1x1xf32>
      %c0_46 = arith.constant 0 : index
      %c0_47 = arith.constant 0 : index
      %89 = vector.load %arg9[%c0_46, %c0_47] : memref<1x1xf32, #tpu.memory_space<vmem>>, vector<1x1xf32>
      tpu.vector_store %arg9[%c0_46, %c0_47], %88 {strides = array<i32>} : memref<1x1xf32, #tpu.memory_space<vmem>>, vector<1x1xf32>,
    } else {
    }
    %c0 = arith.constant 0 : index
    %c0_1 = arith.constant 0 : index
    %c0_2 = arith.constant 0 : index
    %3 = vector.load %arg3[%c0, %c0_1, %c0_2] : memref<1x4x256xf32, #tpu.memory_space<vmem>>, vector<1x4x256xf32>
    %4 = vector.shape_cast %3 : vector<1x4x256xf32> to vector<4x256xf32>
    %c0_3 = arith.constant 0 : index
    %c0_4 = arith.constant 0 : index
    %c0_5 = arith.constant 0 : index
    %5 = vector.load %arg4[%c0_3, %c0_4, %c0_5] : memref<1x1x256xi32, #tpu.memory_space<vmem>>, vector<1x1x256xi32>
    %6 = vector.shape_cast %5 : vector<1x1x256xi32> to vector<1x256xi32>
    %c1_i32 = arith.constant 1 : i32
    %7 = arith.muli %arg1, %c1_i32 : i32
    %8 = arith.addi %7, %arg2 : i32
    %c256_i32 = arith.constant 256 : i32
    %9 = arith.muli %8, %c256_i32 : i32
    %10 = tpu.iota {dimensions = array<i32: 1>} : vector<1x256xi32>
    %11 = vector.broadcast %9 : i32 to vector<1x256xi32>
    %12 = arith.addi %11, %10 : vector<1x256xi32>
    %c256_i32_6 = arith.constant 256 : i32
    %13 = vector.broadcast %c256_i32_6 : i32 to vector<1x256xi32>
    %14 = arith.cmpi slt, %12, %13 : vector<1x256xi32>
    %cst = arith.constant 0.000000e+00 : f32
    %15 = vector.shape_cast %14 : vector<1x256xi1> to vector<1x256xi1>
    %16 = vector.broadcast %15 : vector<1x256xi1> to vector<4x256xi1>
    %17 = vector.broadcast %cst : f32 to vector<4x256xf32>
    %18 = arith.select %16, %4, %17 : vector<4x256xi1>, vector<4x256xf32>
    %c255_i32 = arith.constant 255 : i32
    %19 = vector.broadcast %c255_i32 : i32 to vector<1x256xi32>
    %20 = arith.select %14, %6, %19 : vector<1x256xi1>, vector<1x256xi32>
    %cst_7 = arith.constant dense<0xFF800000> : vector<256xf32>
    %21 = vector.multi_reduction <maximumf>, %18, %cst_7 [0] : vector<4x256xf32> to vector<256xf32>
    %22 = vector.shape_cast %21 : vector<256xf32> to vector<1x256xf32>
    %23 = vector.broadcast %22 : vector<1x256xf32> to vector<4x256xf32>
    %24 = arith.subf %18, %23 : vector<4x256xf32>
    %25 = math.exp %24 : vector<4x256xf32>
    %cst_8 = arith.constant dense<0.000000e+00> : vector<256xf32>
    %26 = vector.multi_reduction <add>, %25, %cst_8 [0] : vector<4x256xf32> to vector<256xf32>
    %27 = vector.shape_cast %26 : vector<256xf32> to vector<1x256xf32>
    %28 = math.log %27 : vector<1x256xf32>
    %29 = arith.addf %22, %28 : vector<1x256xf32>
    %30 = tpu.reciprocal %27 : vector<1x256xf32> -> vector<1x256xf32>
    %31 = arith.extui %14 : vector<1x256xi1> to vector<1x256xi32>
    %32 = arith.sitofp %31 : vector<1x256xi32> to vector<1x256xf32>
    %33 = arith.mulf %30, %32 : vector<1x256xf32>
    %34 = vector.broadcast %33 : vector<1x256xf32> to vector<4x256xf32>
    %35 = arith.mulf %25, %34 : vector<4x256xf32>
    %36 = tpu.iota {dimensions = array<i32: 0>} : vector<4x256xi32>
    %37 = vector.broadcast %20 : vector<1x256xi32> to vector<4x256xi32>
    %38 = arith.cmpi eq, %36, %37 : vector<4x256xi32>
    %39 = arith.extui %38 : vector<4x256xi1> to vector<4x256xi32>
    %40 = arith.sitofp %39 : vector<4x256xi32> to vector<4x256xf32>
    %41 = arith.mulf %35, %40 : vector<4x256xf32>
    %c255_i32_9 = arith.constant 255 : i32
    %42 = vector.broadcast %c255_i32_9 : i32 to vector<1x256xi32>
    %43 = arith.cmpi ne, %20, %42 : vector<1x256xi32>
    %44 = arith.extui %43 : vector<1x256xi1> to vector<1x256xi32>
    %45 = arith.sitofp %44 : vector<1x256xi32> to vector<1x256xf32>
    %46 = arith.mulf %18, %40 : vector<4x256xf32>
    %cst_10 = arith.constant dense<0.000000e+00> : vector<256xf32>
    %47 = vector.multi_reduction <add>, %46, %cst_10 [0] : vector<4x256xf32> to vector<256xf32>
    %48 = vector.shape_cast %47 : vector<256xf32> to vector<1x256xf32>
    %49 = arith.subf %29, %48 : vector<1x256xf32>
    %50 = arith.mulf %49, %45 : vector<1x256xf32>
    %cst_11 = arith.constant dense<0.000000e+00> : vector<256xf32>
    %51 = vector.multi_reduction <add>, %41, %cst_11 [0] : vector<4x256xf32> to vector<256xf32>
    %52 = vector.shape_cast %51 : vector<256xf32> to vector<1x256xf32>
    %cst_12 = arith.constant 1.000000e+00 : f32
    %53 = vector.broadcast %cst_12 : f32 to vector<1x256xf32>
    %54 = arith.subf %53, %52 : vector<1x256xf32>
    %cst_13 = arith.constant 1.000000e+00 : f32
    %55 = vector.broadcast %cst_13 : f32 to vector<1x256xf32>
    %56 = arith.mulf %55, %54 : vector<1x256xf32>
    %57 = arith.mulf %56, %54 : vector<1x256xf32>
    %58 = arith.mulf %57, %50 : vector<1x256xf32>
    %c0_14 = arith.constant 0 : index
    %c0_15 = arith.constant 0 : index
    %59 = vector.load %arg6[%c0_14, %c0_15] : memref<4x1xf32, #tpu.memory_space<vmem>>, vector<4x1xf32>
    %cst_16 = arith.constant dense<0.000000e+00> : vector<4xf32>
    %60 = vector.multi_reduction <add>, %41, %cst_16 [1] : vector<4x256xf32> to vector<4xf32>
    %61 = vector.shape_cast %60 : vector<4xf32> to vector<4x1xf32>
    %62 = arith.addf %59, %61 : vector<4x1xf32>
    %c0_17 = arith.constant 0 : index
    %c0_18 = arith.constant 0 : index
    %63 = vector.load %arg6[%c0_17, %c0_18] : memref<4x1xf32, #tpu.memory_space<vmem>>, vector<4x1xf32>
    tpu.vector_store %arg6[%c0_17, %c0_18], %62 {strides = array<i32>} : memref<4x1xf32, #tpu.memory_space<vmem>>, vector<4x1xf32>,
    %c0_19 = arith.constant 0 : index
    %c0_20 = arith.constant 0 : index
    %64 = vector.load %arg7[%c0_19, %c0_20] : memref<4x1xf32, #tpu.memory_space<vmem>>, vector<4x1xf32>
    %cst_21 = arith.constant dense<0.000000e+00> : vector<4xf32>
    %65 = vector.multi_reduction <add>, %35, %cst_21 [1] : vector<4x256xf32> to vector<4xf32>
    %66 = vector.shape_cast %65 : vector<4xf32> to vector<4x1xf32>
    %67 = arith.addf %64, %66 : vector<4x1xf32>
    %c0_22 = arith.constant 0 : index
    %c0_23 = arith.constant 0 : index
    %68 = vector.load %arg7[%c0_22, %c0_23] : memref<4x1xf32, #tpu.memory_space<vmem>>, vector<4x1xf32>
    tpu.vector_store %arg7[%c0_22, %c0_23], %67 {strides = array<i32>} : memref<4x1xf32, #tpu.memory_space<vmem>>, vector<4x1xf32>,
    %c0_24 = arith.constant 0 : index
    %c0_25 = arith.constant 0 : index
    %69 = vector.load %arg8[%c0_24, %c0_25] : memref<4x1xf32, #tpu.memory_space<vmem>>, vector<4x1xf32>
    %cst_26 = arith.constant dense<0.000000e+00> : vector<4xf32>
    %70 = vector.multi_reduction <add>, %40, %cst_26 [1] : vector<4x256xf32> to vector<4xf32>
    %71 = vector.shape_cast %70 : vector<4xf32> to vector<4x1xf32>
    %72 = arith.addf %69, %71 : vector<4x1xf32>
    %c0_27 = arith.constant 0 : index
    %c0_28 = arith.constant 0 : index
    %73 = vector.load %arg8[%c0_27, %c0_28] : memref<4x1xf32, #tpu.memory_space<vmem>>, vector<4x1xf32>
    tpu.vector_store %arg8[%c0_27, %c0_28], %72 {strides = array<i32>} : memref<4x1xf32, #tpu.memory_space<vmem>>, vector<4x1xf32>,
    %c0_29 = arith.constant 0 : index
    %c0_30 = arith.constant 0 : index
    %74 = vector.load %arg9[%c0_29, %c0_30] : memref<1x1xf32, #tpu.memory_space<vmem>>, vector<1x1xf32>
    %cst_31 = arith.constant dense<0.000000e+00> : vector<1xf32>
    %75 = vector.multi_reduction <add>, %58, %cst_31 [1] : vector<1x256xf32> to vector<1xf32>
    %76 = vector.shape_cast %75 : vector<1xf32> to vector<1x1xf32>
    %77 = arith.addf %74, %76 : vector<1x1xf32>
    %c0_32 = arith.constant 0 : index
    %c0_33 = arith.constant 0 : index
    %78 = vector.load %arg9[%c0_32, %c0_33] : memref<1x1xf32, #tpu.memory_space<vmem>>, vector<1x1xf32>
    tpu.vector_store %arg9[%c0_32, %c0_33], %77 {strides = array<i32>} : memref<1x1xf32, #tpu.memory_space<vmem>>, vector<1x1xf32>,
    %c0_i32_34 = arith.constant 0 : i32
    %79 = arith.cmpi eq, %arg2, %c0_i32_34 : i32
    %80 = arith.extui %79 : i1 to i32
    %c0_i32_35 = arith.constant 0 : i32
    %81 = arith.cmpi ne, %80, %c0_i32_35 : i32
    scf.if %81 {
      %c0_36 = arith.constant 0 : index
      %c0_37 = arith.constant 0 : index
      %82 = vector.load %arg6[%c0_36, %c0_37] : memref<4x1xf32, #tpu.memory_space<vmem>>, vector<4x1xf32>
      %cst_38 = arith.constant dense<0.000000e+00> : vector<4xf32>
      %83 = vector.multi_reduction <add>, %82, %cst_38 [1] : vector<4x1xf32> to vector<4xf32>
      %84 = vector.shape_cast %83 : vector<4xf32> to vector<1x4xf32>
      %c0_39 = arith.constant 0 : index
      %c0_40 = arith.constant 0 : index
      %85 = vector.load %arg7[%c0_39, %c0_40] : memref<4x1xf32, #tpu.memory_space<vmem>>, vector<4x1xf32>
      %cst_41 = arith.constant dense<0.000000e+00> : vector<4xf32>
      %86 = vector.multi_reduction <add>, %85, %cst_41 [1] : vector<4x1xf32> to vector<4xf32>
      %87 = vector.shape_cast %86 : vector<4xf32> to vector<1x4xf32>
      %c0_42 = arith.constant 0 : index
      %c0_43 = arith.constant 0 : index
      %88 = vector.load %arg8[%c0_42, %c0_43] : memref<4x1xf32, #tpu.memory_space<vmem>>, vector<4x1xf32>
      %cst_44 = arith.constant dense<0.000000e+00> : vector<4xf32>
      %89 = vector.multi_reduction <add>, %88, %cst_44 [1] : vector<4x1xf32> to vector<4xf32>
      %90 = vector.shape_cast %89 : vector<4xf32> to vector<1x4xf32>
      %c0_45 = arith.constant 0 : index
      %c0_46 = arith.constant 0 : index
      %91 = vector.load %arg9[%c0_45, %c0_46] : memref<1x1xf32, #tpu.memory_space<vmem>>, vector<1x1xf32>
      %92 = vector.shape_cast %91 : vector<1x1xf32> to vector<1x1xf32>
      %93 = vector.broadcast %92 : vector<1x1xf32> to vector<1x4xf32>
      %c0_47 = arith.constant 0 : index
      %c0_48 = arith.constant 0 : index
      %c0_49 = arith.constant 0 : index
      %c0_50 = arith.constant 0 : index
      %94 = vector.load %arg5[%c0_47, %c0_48, %c0_49, %c0_50] : memref<1x1x4x4xf32, #tpu.memory_space<vmem>>, vector<1x1x1x4xf32>
      %95 = vector.shape_cast %94 : vector<1x1x1x4xf32> to vector<1x4xf32>
      %96 = vector.shape_cast %84 : vector<1x4xf32> to vector<1x1x1x4xf32>
      tpu.vector_store %arg5[%c0_47, %c0_48, %c0_49, %c0_50], %96 {strides = array<i32>} : memref<1x1x4x4xf32, #tpu.memory_space<vmem>>, vector<1x1x1x4xf32>,
      %c0_51 = arith.constant 0 : index
      %c0_52 = arith.constant 0 : index
      %c1 = arith.constant 1 : index
      %c0_53 = arith.constant 0 : index
      %97 = vector.load %arg5[%c0_51, %c0_52, %c1, %c0_53] : memref<1x1x4x4xf32, #tpu.memory_space<vmem>>, vector<1x1x1x4xf32>
      %98 = vector.shape_cast %97 : vector<1x1x1x4xf32> to vector<1x4xf32>
      %99 = vector.shape_cast %87 : vector<1x4xf32> to vector<1x1x1x4xf32>
      tpu.vector_store %arg5[%c0_51, %c0_52, %c1, %c0_53], %99 {strides = array<i32>} : memref<1x1x4x4xf32, #tpu.memory_space<vmem>>, vector<1x1x1x4xf32>,
      %c0_54 = arith.constant 0 : index
      %c0_55 = arith.constant 0 : index
      %c2 = arith.constant 2 : index
      %c0_56 = arith.constant 0 : index
      %100 = vector.load %arg5[%c0_54, %c0_55, %c2, %c0_56] : memref<1x1x4x4xf32, #tpu.memory_space<vmem>>, vector<1x1x1x4xf32>
      %101 = vector.shape_cast %100 : vector<1x1x1x4xf32> to vector<1x4xf32>
      %102 = vector.shape_cast %90 : vector<1x4xf32> to vector<1x1x1x4xf32>
      tpu.vector_store %arg5[%c0_54, %c0_55, %c2, %c0_56], %102 {strides = array<i32>} : memref<1x1x4x4xf32, #tpu.memory_space<vmem>>, vector<1x1x1x4xf32>,
      %c0_57 = arith.constant 0 : index
      %c0_58 = arith.constant 0 : index
      %c3 = arith.constant 3 : index
      %c0_59 = arith.constant 0 : index
      %103 = vector.load %arg5[%c0_57, %c0_58, %c3, %c0_59] : memref<1x1x4x4xf32, #tpu.memory_space<vmem>>, vector<1x1x1x4xf32>
      %104 = vector.shape_cast %103 : vector<1x1x1x4xf32> to vector<1x4xf32>
      %105 = vector.shape_cast %93 : vector<1x4xf32> to vector<1x1x1x4xf32>
      tpu.vector_store %arg5[%c0_57, %c0_58, %c3, %c0_59], %105 {strides = array<i32>} : memref<1x1x4x4xf32, #tpu.memory_space<vmem>>, vector<1x1x1x4xf32>,
    } else {
    }
    return
  }
  func.func @transform_0(%arg0: i32, %arg1: i32, %arg2: i32) -> (i32, i32, i32) {
    %c1_i32 = arith.constant 1 : i32
    %0 = arith.muli %arg1, %c1_i32 : i32
    %1 = arith.addi %0, %arg2 : i32
    %c0_i32 = arith.constant 0 : i32
    %c0_i32_0 = arith.constant 0 : i32
    return %arg0, %c0_i32, %1 : i32, i32, i32
  }
  func.func @transform_1(%arg0: i32, %arg1: i32, %arg2: i32) -> (i32, i32, i32) {
    %c1_i32 = arith.constant 1 : i32
    %0 = arith.muli %arg1, %c1_i32 : i32
    %1 = arith.addi %0, %arg2 : i32
    %c0_i32 = arith.constant 0 : i32
    %c0_i32_0 = arith.constant 0 : i32
    return %arg0, %c0_i32, %1 : i32, i32, i32
  }
  func.func @transform_2(%arg0: i32, %arg1: i32, %arg2: i32) -> (i32, i32, i32, i32) {
    %c0_i32 = arith.constant 0 : i32
    %c0_i32_0 = arith.constant 0 : i32
    %c0_i32_1 = arith.constant 0 : i32
    return %arg0, %arg1, %c0_i32, %c0_i32_0 : i32, i32, i32, i32
  }
}

</mosaic_0001>

<llo_original>
// kernel: combined_loss.1
$region0: #{combined_loss.1}
  #allocation0 [shape = 'u32[]', space=smem, size = 0x4, offset = 0x4, fixed_abs, tag = 'smem constant byte address 0x4 - core index']
  #allocation1 [shape = 'u32[144,128]{1,0:T(1,128)}', space=vmem, size = 0x12000, scoped, tag = 'internal scratch']
  #allocation2 [shape = 'f32[4,1]{1,0:T(4,128)}', space=vmem, size = 0x800, scoped, tag = 'scratch operand']
  #allocation3 [shape = 'f32[4,1]{1,0:T(4,128)}', space=vmem, size = 0x800, scoped, tag = 'scratch operand']
  #allocation4 [shape = 'f32[4,1]{1,0:T(4,128)}', space=vmem, size = 0x800, scoped, tag = 'scratch operand']
  #allocation5 [shape = 'f32[1,1]{1,0:T(1,128)}', space=vmem, size = 0x200, scoped, tag = 'scratch operand']
  %s0 = inlined_call_operand.vmem [shape: f32[2,4,256], index: 0, kind: input, shape index: {}]
  %s1 = inlined_call_operand.vmem [shape: s32[2,1,256], index: 1, kind: input, shape index: {}]
  %s2 = inlined_call_operand.vmem [shape: f32[2,1,4,4], index: 2, kind: output, shape index: {}]
  %s3 = sld [smem:[#allocation0]]
  $region49: #{combined_loss.1} parent=0
    _
  %s5 = ssub.s32 1, %s3
  %s6 = scalar_select 0, %s5, %s3
  loop: start=0, step=1, limit=4
  $region2: #{combined_loss.1} parent=0 // loop_pre_header
    _
  $region3: #{combined_loss.1} parent=0 // loop_header
    %s8 = sphi 0, %s12
    %p9 = scmp.ge.s32.totalorder %s8, 4
    %s15 = sphi 0, %s34
    %s16 = sphi 0, %s30
    %s17 = sphi 0, %s26
    %s18 = sphi 0, %s15
    %s19 = sphi 0, %s16
    %s20 = sphi 0, %s17
    %s21 = sphi 0, %s18
    %s22 = sphi 0, %s19
    %s23 = sphi 0, %s20
    %s41 = sphi 0, %s43
    %s44 = sphi 0, %s41
    %s45 = sphi 0, %s44
    %s61 = sphi 0, %s45
    %s71 = sphi 0, %s73
    %s74 = sphi 0, %s71
    %s75 = sphi 0, %s74
    %s91 = sphi 0, %s75
    %s99 = sphi 0, %s101
    %s102 = sphi 0, %s99
    %s103 = sphi 0, %s102
    %s119 = sphi 0, %s103
  $region4: #{combined_loss.1} parent=0 // loop_header_branch
    %11 = sbr.rel (%p9) target = $region8
  $region5: #{combined_loss.1} parent=0 // loop_body
    %s13 = ssub.s32 %s8, 1
    %s14 = ssub.s32 %s8, 2
    %s24 = sadd.s32 1, %s17
    %p25 = scmp.ge.s32.totalorder %s24, 1
    %s26 = scalar_select %p25, 0, %s24
    %s27 = sadd.s32 1, %s16
    %s28 = scalar_select %p25, %s27, %s16
    %p29 = scmp.ge.s32.totalorder %s28, 1
    %s30 = scalar_select %p29, 0, %s28
    %s31 = sadd.s32 1, %s15
    %s32 = scalar_select %p29, %s31, %s15
    %p33 = scmp.ge.s32.totalorder %s32, 2
    %s34 = scalar_select %p33, 0, %s32
    %s35 = sadd.s32 %s16, %s17
    %s36 = sadd.s32 %s30, %s26
    %s37 = ssub.s32 %s15, %s34
    %s38 = ssub.s32 %s35, %s36
    %s39 = sor.u32 %s37, %s38
    %p40 = scmp.eq.s32.totalorder %s39, 0
    %s42 = sadd.s32 %s41, 1
    %s43 = scalar_select %p40, %s41, %s42
    %p46 = pneg %p40
    %p47 = scmp.eq.s32.totalorder %s8, 1
    %p48 = por %p46, %p47
    %p49 = scmp.ne.s32.totalorder %s41, %s44
    %p50 = scmp.eq.s32.totalorder %s8, 0
    %p51 = por %p49, %p50
    %p52 = scmp.ne.s32.totalorder %s41, %s44
    %p53 = scmp.eq.s32.totalorder %s13, 1
    %p54 = por %p52, %p53
    %p55 = scmp.ne.s32.totalorder %s44, %s45
    %p56 = scmp.eq.s32.totalorder %s13, 0
    %p57 = por %p55, %p56
    %p58 = scmp.ne.s32.totalorder %s44, %s45
    %p59 = scmp.eq.s32.totalorder %s14, 1
    %p60 = por %p58, %p59
    %p62 = scmp.ne.s32.totalorder %s45, %s61
    %p63 = scmp.eq.s32.totalorder %s14, 0
    %p64 = por %p62, %p63
    %s65 = sadd.s32 %s16, %s17
    %s66 = sadd.s32 %s30, %s26
    %s67 = ssub.s32 %s15, %s34
    %s68 = ssub.s32 %s65, %s66
    %s69 = sor.u32 %s67, %s68
    %p70 = scmp.eq.s32.totalorder %s69, 0
    %s72 = sadd.s32 %s71, 1
    %s73 = scalar_select %p70, %s71, %s72
    %p76 = pneg %p70
    %p77 = scmp.eq.s32.totalorder %s8, 1
    %p78 = por %p76, %p77
    %p79 = scmp.ne.s32.totalorder %s71, %s74
    %p80 = scmp.eq.s32.totalorder %s8, 0
    %p81 = por %p79, %p80
    %p82 = scmp.ne.s32.totalorder %s71, %s74
    %p83 = scmp.eq.s32.totalorder %s13, 1
    %p84 = por %p82, %p83
    %p85 = scmp.ne.s32.totalorder %s74, %s75
    %p86 = scmp.eq.s32.totalorder %s13, 0
    %p87 = por %p85, %p86
    %p88 = scmp.ne.s32.totalorder %s74, %s75
    %p89 = scmp.eq.s32.totalorder %s14, 1
    %p90 = por %p88, %p89
    %p92 = scmp.ne.s32.totalorder %s75, %s91
    %p93 = scmp.eq.s32.totalorder %s14, 0
    %p94 = por %p92, %p93
    %s95 = ssub.s32 %s15, %s34
    %s96 = ssub.s32 %s16, %s30
    %s97 = sor.u32 %s95, %s96
    %p98 = scmp.eq.s32.totalorder %s97, 0
    %s100 = sadd.s32 %s99, 1
    %s101 = scalar_select %p98, %s99, %s100
    %p104 = pneg %p98
    %p105 = scmp.eq.s32.totalorder %s8, 1
    %p106 = por %p104, %p105
    %p107 = scmp.ne.s32.totalorder %s99, %s102
    %p108 = scmp.eq.s32.totalorder %s8, 0
    %p109 = por %p107, %p108
    %p110 = scmp.ne.s32.totalorder %s99, %s102
    %p111 = scmp.eq.s32.totalorder %s13, 1
    %p112 = por %p110, %p111
    %p113 = scmp.ne.s32.totalorder %s102, %s103
    %p114 = scmp.eq.s32.totalorder %s13, 0
    %p115 = por %p113, %p114
    %p116 = scmp.ne.s32.totalorder %s102, %s103
    %p117 = scmp.eq.s32.totalorder %s14, 1
    %p118 = por %p116, %p117
    %p120 = scmp.ne.s32.totalorder %s103, %s119
    %p121 = scmp.eq.s32.totalorder %s14, 0
    %p122 = por %p120, %p121
    %p123 = scmp.le.s32.totalorder 1, %s8
    %p124 = scmp.lt.s32.totalorder %s8, 3
    %p125 = pnand %p123, %p124
    %p126 = pneg %p125
    // Predicated region
    $region9: #{combined_loss.1} parent=5 // pred_check
      _
    $region10: #{combined_loss.1} parent=5 // pred_check_branch
      %128 = sbr.rel (%p125) target = $region12
    $region11: #{combined_loss.1} parent=5 // pred_region
      %s129 = ssub.s32 %s8, 1
    $region12: #{combined_loss.1} parent=5 // pred_fallthru
      _
    %p130 = scmp.lt.s32.totalorder %s8, 2
    // Predicated region
    $region13: #{combined_loss.1} parent=5 // pred_check
      %p131 = pneg %p130
    $region14: #{combined_loss.1} parent=5 // pred_check_branch
      %133 = sbr.rel (%p131) target = $region16
    $region15: #{combined_loss.1} parent=5 // pred_region
      // Predicated region
      $region17: #{combined_loss.1} parent=15 // pred_check
        %p134 = pneg %p51
      $region18: #{combined_loss.1} parent=15 // pred_check_branch
        %136 = sbr.rel (%p134) target = $region20
      $region19: #{combined_loss.1} parent=15 // pred_region
        %s137 = sadd.s32 %s16, %s17
        %s138 = smul.u32 2, %s137
        %p139 = scmp.lt.s32.totalorder %s15, 1
        %s140 = scalar_select %p139, %s15, 1
        %p141 = scmp.lt.s32.totalorder %s138, 1
        %s142 = scalar_select %p141, %s138, 1
        %s143 = smul.addr %s140, 2
        %s144 = sadd.s32 %s142, %s143
        %s145 = smul.addr %s144, 4
        %s146 = scalar_lea.vmem %s0, %s145
        %s147 = sadd.s32 %s16, %s17
        %s148 = smul.u32 2, %s147
      $region20: #{combined_loss.1} parent=15 // pred_fallthru
        _
      // Predicated region
      $region21: #{combined_loss.1} parent=15 // pred_check
        %p149 = pneg %p81
      $region22: #{combined_loss.1} parent=15 // pred_check_branch
        %151 = sbr.rel (%p149) target = $region24
      $region23: #{combined_loss.1} parent=15 // pred_region
        %s152 = sadd.s32 %s16, %s17
        %s153 = smul.u32 2, %s152
        %p154 = scmp.lt.s32.totalorder %s15, 1
        %s155 = scalar_select %p154, %s15, 1
        %p156 = scmp.lt.s32.totalorder %s153, 1
        %s157 = scalar_select %p156, %s153, 1
        %s158 = smul.addr %s155, 2
        %s159 = sadd.s32 %s157, %s158
        %s160 = scalar_lea.vmem %s1, %s159
        %s161 = sadd.s32 %s16, %s17
        %s162 = smul.u32 2, %s161
      $region24: #{combined_loss.1} parent=15 // pred_fallthru
        _
    $region16: #{combined_loss.1} parent=5 // pred_fallthru
      _
    %p163 = scmp.le.s32.totalorder 1, %s8
    %p164 = scmp.lt.s32.totalorder %s8, 3
    %p165 = pnand %p163, %p164
    %p166 = pneg %p165
    // Predicated region
    $region25: #{combined_loss.1} parent=5 // pred_check
      _
    $region26: #{combined_loss.1} parent=5 // pred_check_branch
      %168 = sbr.rel (%p165) target = $region28
    $region27: #{combined_loss.1} parent=5 // pred_region
      %s169 = ssub.s32 %s8, 1
      %s170 = sadd.s32 %s19, %s20
      %s171 = smul.u32 2, %s170
      %p172 = scmp.lt.s32.totalorder %s18, 1
      %s173 = scalar_select %p172, %s18, 1
      %p174 = scmp.lt.s32.totalorder %s171, 1
      %s175 = scalar_select %p174, %s171, 1
      %s176 = smul.addr %s173, 2
      %s177 = sadd.s32 %s175, %s176
      %s178 = smul.addr %s177, 4
      %s179 = scalar_lea.vmem %s0, %s178
      %p180 = pneg %p57
      %p181 = pneg %p54
      %s182 = sadd.s32 %s19, %s20
      %s183 = smul.u32 2, %s182
      %p184 = scmp.lt.s32.totalorder %s18, 1
      %s185 = scalar_select %p184, %s18, 1
      %p186 = scmp.lt.s32.totalorder %s183, 1
      %s187 = scalar_select %p186, %s183, 1
      %s188 = smul.addr %s185, 2
      %s189 = sadd.s32 %s187, %s188
      %s190 = scalar_lea.vmem %s1, %s189
      %p191 = pneg %p87
      %p192 = pneg %p84
      %p193 = pneg %p115
      %p194 = pneg %p112
      %p195 = scmp.lt.s32.totalorder %s18, 1
      %s196 = scalar_select %p195, %s18, 1
      %p197 = scmp.lt.s32.totalorder %s19, 0
      %s198 = scalar_select %p197, %s19, 0
      %s199 = sadd.s32 %s198, %s196
      %s200 = smul.addr %s199, 4
      %s201 = scalar_lea.vmem %s2, %s200
      %s202 = sadd.s32 %s19, %s20
      %s203 = smul.u32 2, %s202
      %p204 = scmp.lt.s32.totalorder %s18, 1
      %s205 = scalar_select %p204, %s18, 1
      %p206 = scmp.lt.s32.totalorder %s203, 1
      %s207 = scalar_select %p206, %s203, 1
      %s208 = smul.addr %s205, 2
      %s209 = sadd.s32 %s207, %s208
      %s210 = smul.addr %s209, 4
      %s211 = scalar_lea.vmem %s0, %s210
      %s212 = sadd.s32 %s19, %s20
      %s213 = smul.u32 2, %s212
      %s214 = sadd.s32 %s19, %s20
      %s215 = smul.u32 2, %s214
      %p216 = scmp.lt.s32.totalorder %s18, 1
      %s217 = scalar_select %p216, %s18, 1
      %p218 = scmp.lt.s32.totalorder %s215, 1
      %s219 = scalar_select %p218, %s215, 1
      %s220 = smul.addr %s217, 2
      %s221 = sadd.s32 %s219, %s220
      %s222 = scalar_lea.vmem %s1, %s221
      %s223 = sadd.s32 %s19, %s20
      %s224 = smul.u32 2, %s223
      %p225 = scmp.lt.s32.totalorder %s18, 1
      %s226 = scalar_select %p225, %s18, 1
      %p227 = scmp.lt.s32.totalorder %s19, 0
      %s228 = scalar_select %p227, %s19, 0
      %s229 = sadd.s32 %s228, %s226
      %s230 = smul.addr %s229, 4
      %s231 = scalar_lea.vmem %s2, %s230
      %p232 = scmp.eq.s32.totalorder %s20, 0
      // Predicated region
      $region29: #{combined_loss.1} parent=27 // pred_check
        %p233 = pneg %p232
      $region30: #{combined_loss.1} parent=27 // pred_check_branch
        %235 = sbr.rel (%p233) target = $region32
      $region31: #{combined_loss.1} parent=27 // pred_region
        %vm236 = vcmask 3072
        %237 = vst.msk [vmem:[#allocation2] sm:$0xf] %vm236, 0.0
        %238 = vst.msk [vmem:[#allocation3] sm:$0xf] %vm236, 0.0
        %239 = vst.msk [vmem:[#allocation4] sm:$0xf] %vm236, 0.0
        %vm240 = vcmask 0
        %241 = vst.msk [vmem:[#allocation5] sm:$0x1] %vm240, 0.0
      $region32: #{combined_loss.1} parent=27 // pred_fallthru
        _
      %v242 = vld [vmem:[%s211] sm:$0xff]
      %v243 = vld [vmem:[%s222] sm:$0x3]
      %s244 = sadd.s32 %s19, %s20
      %s245 = smul.u32 %s244, 256
      %v246 = vlaneseq
      %v247 = vand.u32 %v246, 127
      %v248 = vadd.s32 %v247, 128
      %v249 = vstv %s245
      %v250 = vadd.s32 %v249, %v247
      %v251 = vadd.s32 %v249, %v248
      %vm252 = vcmp.lt.s32.totalorder %v250, 256
      %vm253 = vcmp.lt.s32.totalorder %v251, 256
      %v254 = vsel %vm252, 1, 0
      %v255 = vsel %vm253, 1, 0
      %vm256 = vcmp.eq.s32.totalorder %v254, 1
      %vm257 = vcmp.eq.s32.totalorder %v255, 1
      %v259 = vcombine.high %v242, %v242
      %v261 = vsel %vm256, %v242, 0.0
      %v262 = vsel %vm257, %v259, 0.0
      %v263 = vlaneseq
      %v264 = vshrl.u32 %v263, 7
      %v265 = vsub.s32 0, %v264
      %v266 = vrot.slane %v243, %v265
      %v267 = vlaneseq
      %v268 = vshrl.u32 %v267, 7
      %v269 = vsub.s32 1, %v268
      %v270 = vrot.slane %v243, %v269
      %v271 = vsel %vm252, %v266, 255
      %v272 = vsel %vm253, %v270, 255
      %vm273 = vcmask 1043456
      %v274 = vsel %vm273, %v261, -inf
      %v275 = vrot.slane %v274, 4
      %v276 = vmax.f32 %v274, %v275
      %v277 = vrot.slane %v276, 2
      %v278 = vmax.f32 %v276, %v277
      %v279 = vrot.slane %v278, 1
      %v280 = vmax.f32 %v278, %v279
      %v281 = vsel %vm273, %v262, -inf
      %v282 = vrot.slane %v281, 4
      %v283 = vmax.f32 %v281, %v282
      %v284 = vrot.slane %v283, 2
      %v285 = vmax.f32 %v283, %v284
      %v286 = vrot.slane %v285, 1
      %v287 = vmax.f32 %v285, %v286
      %v288 = vsub.f32 %v261, %v280
      %v289 = vsub.f32 %v262, %v287
      %v290 = vmul.f32 %v288, 1.442695
      %v291 = vpow.pop %v290
      %v292 = vmul.f32 %v289, 1.442695
      %v293 = vpow.pop %v292
      %v294 = vsel %vm273, %v291, 0.0
      %v295 = vrot.slane %v294, 4
      %v296 = vadd.f32 %v294, %v295
      %v297 = vrot.slane %v296, 2
      %v298 = vadd.f32 %v296, %v297
      %v299 = vrot.slane %v298, 1
      %v300 = vadd.f32 %v298, %v299
      %v301 = vsel %vm273, %v293, 0.0
      %v302 = vrot.slane %v301, 4
      %v303 = vadd.f32 %v301, %v302
      %v304 = vrot.slane %v303, 2
      %v305 = vadd.f32 %v303, %v304
      %v306 = vrot.slane %v305, 1
      %v307 = vadd.f32 %v305, %v306
      %v308 = vlog2.pop %v300
      %v309 = vmul.f32 %v308, 0.6931472
      %v310 = vlog2.pop %v307
      %v311 = vmul.f32 %v310, 0.6931472
      %v312 = vadd.f32 %v280, %v309
      %v313 = vadd.f32 %v287, %v311
      %v314 = vrcp.pop %v300
      %v315 = vrcp.pop %v307
      %v316 = vcvt.s32.f32 %v254
      %v317 = vcvt.s32.f32 %v255
      %v318 = vmul.f32 %v314, %v316
      %v319 = vmul.f32 %v315, %v317
      %v320 = vmul.f32 %v291, %v318
      %v321 = vmul.f32 %v293, %v319
      %v322 = vlaneseq
      %v323 = vshrl.u32 %v322, 7
      %v324 = vlaneseq
      %v325 = vshrl.u32 %v324, 7
      %v326 = vsub.s32 0, %v325
      %v327 = vrot.slane %v271, %v326
      %v328 = vlaneseq
      %v329 = vshrl.u32 %v328, 7
      %v330 = vsub.s32 0, %v329
      %v331 = vrot.slane %v272, %v330
      %vm332 = vcmp.eq.s32.totalorder %v323, %v327
      %vm333 = vcmp.eq.s32.totalorder %v323, %v331
      %v334 = vsel %vm332, 1, 0
      %v335 = vsel %vm333, 1, 0
      %v336 = vcvt.s32.f32 %v334
      %v337 = vcvt.s32.f32 %v335
      %v338 = vmul.f32 %v320, %v336
      %v339 = vmul.f32 %v321, %v337
      %vm340 = vcmp.ne.s32.totalorder %v271, 255
      %vm341 = vcmp.ne.s32.totalorder %v272, 255
      %v342 = vsel %vm340, 1, 0
      %v343 = vsel %vm341, 1, 0
      %v344 = vcvt.s32.f32 %v342
      %v345 = vcvt.s32.f32 %v343
      %v346 = vmul.f32 %v261, %v336
      %v347 = vmul.f32 %v262, %v337
      %v348 = vsel %vm273, %v346, 0.0
      %v349 = vrot.slane %v348, 4
      %v350 = vadd.f32 %v348, %v349
      %v351 = vrot.slane %v350, 2
      %v352 = vadd.f32 %v350, %v351
      %v353 = vrot.slane %v352, 1
      %v354 = vadd.f32 %v352, %v353
      %v355 = vsel %vm273, %v347, 0.0
      %v356 = vrot.slane %v355, 4
      %v357 = vadd.f32 %v355, %v356
      %v358 = vrot.slane %v357, 2
      %v359 = vadd.f32 %v357, %v358
      %v360 = vrot.slane %v359, 1
      %v361 = vadd.f32 %v359, %v360
      %v362 = vsub.f32 %v312, %v354
      %v363 = vsub.f32 %v313, %v361
      %v364 = vmul.f32 %v362, %v344
      %v365 = vmul.f32 %v363, %v345
      %v366 = vsel %vm273, %v338, 0.0
      %v367 = vrot.slane %v366, 4
      %v368 = vadd.f32 %v366, %v367
      %v369 = vrot.slane %v368, 2
      %v370 = vadd.f32 %v368, %v369
      %v371 = vrot.slane %v370, 1
      %v372 = vadd.f32 %v370, %v371
      %v373 = vsel %vm273, %v339, 0.0
      %v374 = vrot.slane %v373, 4
      %v375 = vadd.f32 %v373, %v374
      %v376 = vrot.slane %v375, 2
      %v377 = vadd.f32 %v375, %v376
      %v378 = vrot.slane %v377, 1
      %v379 = vadd.f32 %v377, %v378
      %v380 = vsub.f32 1.0, %v372
      %v381 = vsub.f32 1.0, %v379
      %v382 = vmul.f32 %v380, %v380
      %v383 = vmul.f32 %v381, %v381
      %v384 = vmul.f32 %v382, %v364
      %v385 = vmul.f32 %v383, %v365
      %v386 = vld [vmem:[#allocation2] sm:$0xf]
      %v387 = vadd.f32 %v366, %v373
      %388 = vadd.xlane.f32.xlu0 %v387
      %v389 = vpop.xlane.xlu0 %388
      %v390 = vadd.f32 %v386, %v389
      %vm391 = vcmask 3072
      %392 = vst.msk [vmem:[#allocation2] sm:$0xf] %vm391, %v390
      %v393 = vld [vmem:[#allocation3] sm:$0xf]
      %v394 = vsel %vm273, %v320, 0.0
      %v395 = vsel %vm273, %v321, 0.0
      %v396 = vadd.f32 %v394, %v395
      %397 = vadd.xlane.f32.xlu0 %v396
      %v398 = vpop.xlane.xlu0 %397
      %v399 = vadd.f32 %v393, %v398
      %400 = vst.msk [vmem:[#allocation3] sm:$0xf] %vm391, %v399
      %v401 = vld [vmem:[#allocation4] sm:$0xf]
      %v402 = vsel %vm273, %v336, 0.0
      %v403 = vsel %vm273, %v337, 0.0
      %v404 = vadd.f32 %v402, %v403
      %405 = vadd.xlane.f32.xlu0 %v404
      %v406 = vpop.xlane.xlu0 %405
      %v407 = vadd.f32 %v401, %v406
      %408 = vst.msk [vmem:[#allocation4] sm:$0xf] %vm391, %v407
      %v409 = vld [vmem:[#allocation5] sm:$0x1]
      %vm410 = vcmask 1040384
      %v411 = vsel %vm410, %v384, 0.0
      %v412 = vsel %vm410, %v385, 0.0
      %v413 = vadd.f32 %v411, %v412
      %414 = vadd.xlane.f32.xlu0 %v413
      %v415 = vpop.xlane.xlu0 %414
      %v416 = vadd.f32 %v409, %v415
      %vm417 = vcmask 0
      %418 = vst.msk [vmem:[#allocation5] sm:$0x1] %vm417, %v416
      // Predicated region
      $region33: #{combined_loss.1} parent=27 // pred_check
        %p419 = pneg %p232
      $region34: #{combined_loss.1} parent=27 // pred_check_branch
        %421 = sbr.rel (%p419) target = $region36
      $region35: #{combined_loss.1} parent=27 // pred_region
        %v422 = vld [vmem:[#allocation2] sm:$0xf]
        %v423 = vadd.f32 %v422, 0.0
        %v424 = vld [vmem:[#allocation3] sm:$0xf]
        %v425 = vadd.f32 %v424, 0.0
        %v426 = vld [vmem:[#allocation4] sm:$0xf]
        %v427 = vadd.f32 %v426, 0.0
        %v428 = vld [vmem:[#allocation5] sm:$0x1]
        %430 = vset.pattern.permute.xlu0 0
        %431 = vperm.xlu0 %430, %v423
        %v432 = vpop.permute.xlu0 %431
        %v433 = vlaneseq
        %v434 = vshrl.u32 %v433, 7
        %v435 = vsub.s32 %v247, %v434
        %v436 = vrot.slane %v432, %v435
        %vm438 = vcmask 24576
        %439 = vst.msk [vmem:[%s231] sm:$0x1] %vm438, %v436
        %441 = vset.pattern.permute.xlu0 0
        %442 = vperm.xlu0 %441, %v425
        %v443 = vpop.permute.xlu0 %442
        %v444 = vlaneseq
        %v445 = vshrl.u32 %v444, 7
        %v446 = vsub.s32 %v247, %v445
        %v447 = vrot.slane %v443, %v446
        %449 = vst.msk [vmem:[%s231 + $0x1] sm:$0x1] %vm438, %v447
        %451 = vset.pattern.permute.xlu0 0
        %452 = vperm.xlu0 %451, %v427
        %v453 = vpop.permute.xlu0 %452
        %v454 = vlaneseq
        %v455 = vshrl.u32 %v454, 7
        %v456 = vsub.s32 %v247, %v455
        %v457 = vrot.slane %v453, %v456
        %459 = vst.msk [vmem:[%s231 + $0x2] sm:$0x1] %vm438, %v457
        %461 = vset.pattern.permute.xlu0 0
        %462 = vperm.xlu0 %461, %v428
        %v463 = vpop.permute.xlu0 %462
        %v465 = vlaneseq
        %v466 = vshrl.u32 %v465, 7
        %v467 = vsub.s32 0, %v466
        %v468 = vrot.slane %v463, %v467
        %469 = vst.msk [vmem:[%s231 + $0x3] sm:$0x1] %vm438, %v468
      $region36: #{combined_loss.1} parent=27 // pred_fallthru
        _
      %p470 = scmp.lt.s32.totalorder %s18, 1
      %s471 = scalar_select %p470, %s18, 1
      %p472 = scmp.lt.s32.totalorder %s19, 0
      %s473 = scalar_select %p472, %s19, 0
      %s474 = sadd.s32 %s473, %s471
      %s475 = smul.addr %s474, 4
      %s476 = scalar_lea.vmem %s2, %s475
      // Predicated region
      $region37: #{combined_loss.1} parent=27 // pred_check
        %p477 = pneg %p112
      $region38: #{combined_loss.1} parent=27 // pred_check_branch
        %479 = sbr.rel (%p477) target = $region40
      $region39: #{combined_loss.1} parent=27 // pred_region
        _
      $region40: #{combined_loss.1} parent=27 // pred_fallthru
        _
    $region28: #{combined_loss.1} parent=5 // pred_fallthru
      _
    %p480 = scmp.le.s32.totalorder 2, %s8
    // Predicated region
    $region41: #{combined_loss.1} parent=5 // pred_check
      %p481 = pneg %p480
    $region42: #{combined_loss.1} parent=5 // pred_check_branch
      %483 = sbr.rel (%p481) target = $region44
    $region43: #{combined_loss.1} parent=5 // pred_region
      %s484 = ssub.s32 %s8, 2
      // Predicated region
      $region45: #{combined_loss.1} parent=43 // pred_check
        %p485 = pneg %p118
      $region46: #{combined_loss.1} parent=43 // pred_check_branch
        %487 = sbr.rel (%p485) target = $region48
      $region47: #{combined_loss.1} parent=43 // pred_region
        %p488 = scmp.lt.s32.totalorder %s21, 1
        %s489 = scalar_select %p488, %s21, 1
        %p490 = scmp.lt.s32.totalorder %s22, 0
        %s491 = scalar_select %p490, %s22, 0
        %s492 = sadd.s32 %s491, %s489
        %s493 = smul.addr %s492, 4
        %s494 = scalar_lea.vmem %s2, %s493
      $region48: #{combined_loss.1} parent=43 // pred_fallthru
        _
    $region44: #{combined_loss.1} parent=5 // pred_fallthru
      _
  $region6: #{combined_loss.1} parent=0 // loop_footer
    %s12 = sadd.s32 1, %s8
  $region7: #{combined_loss.1} parent=0 // loop_footer_branch
    %7 = sbr.rel target = $region3
  $region8: #{combined_loss.1} parent=0 // loop_exit
    _

</llo_original>
